<compile_context>
chip_gen: v7x
topology: tpu7x:2x2x1
jax: 0.10.0
libtpu: 0.0.40
codegen_flags: <defaults>
</compile_context>

<pallas_src>
import math
from functools import partial

import jax
import jax.numpy as jnp
from jax.experimental import pallas as pl
from jax.experimental.pallas import tpu as pltpu

_MiB = 1024 * 1024
_VMEM_BUDGET = 24 * _MiB          # target working set per kernel
_VMEM_LIMIT = 48 * _MiB           # explicit scoped limit (< v7x 64 MiB physical)
_SUPPORT_RESIDENT_MAX = 4 * _MiB  # keep support fully in VMEM below this size


def _round_up(x, m):
    return (x + m - 1) // m * m


def _pad2d(a, rows, cols):
    pr, pc = rows - a.shape[0], cols - a.shape[1]
    if pr == 0 and pc == 0:
        return a
    return jnp.pad(a, ((0, pr), (0, pc)))


def _largest_divisor_tile(total, cap):
    """Largest multiple of 128 that divides `total` and is <= cap (>=128)."""
    best = 128
    t = 128
    while t <= min(cap, total):
        if total % t == 0:
            best = t
        t += 128
    return best


def _next_smaller_divisor(total, t):
    nt = t - 128
    while nt > 128 and total % nt != 0:
        nt -= 128
    return max(nt, 128)


def _shrink_to_budget(total, t0, bytes_fn, budget):
    t = t0
    while t > 128 and bytes_fn(t) > budget:
        t = _next_smaller_divisor(total, t)
    return t


# ---------------------------------------------------------------------------
# Kernel 1: support = X @ W   (row-tiled; in-kernel cast; f32 MXU accumulation)
# ---------------------------------------------------------------------------
def xw_kernel(x_ref, w_ref, s_ref, *, cdt):
    x = x_ref[...].astype(cdt)
    w = w_ref[...].astype(cdt)
    s = jnp.dot(x, w, preferred_element_type=jnp.float32)
    s_ref[...] = s.astype(s_ref.dtype)


# ---------------------------------------------------------------------------
# Kernel 2: out = relu(adj @ support)  (tiled K-reduction, f32 accumulator,
#           adj cast on the tile in-kernel, support resident in VMEM if small)
# ---------------------------------------------------------------------------
def adj_relu_kernel(adj_ref, s_ref, o_ref, acc_ref, *, cdt, tk, support_resident):
    k = pl.program_id(1)

    @pl.when(k == 0)
    def _():
        acc_ref[...] = jnp.zeros_like(acc_ref)

    a = adj_ref[...].astype(cdt)          # VPU cast; free filler in a DMA-bound kernel
    if support_resident:
        off = pl.multiple_of(k * tk, 128)
        s = s_ref[pl.ds(off, tk), :]      # slice the resident VMEM copy
    else:
        s = s_ref[...]
    acc_ref[...] += jnp.dot(a, s, preferred_element_type=jnp.float32)

    @pl.when(k == pl.num_programs(1) - 1)
    def _():
        # ReLU applied only after the full K accumulation; f32 epilogue.
        o_ref[...] = jnp.maximum(acc_ref[...], 0.0).astype(o_ref.dtype)


# ---------------------------------------------------------------------------
# Wrapper
# ---------------------------------------------------------------------------
@partial(jax.jit, static_argnames=("compute_dtype", "tile"))
def graph_convolution(x, weight, adj, *, compute_dtype=jnp.bfloat16, tile=None):
    """relu(adj @ (x @ weight)) — GCN layer forward via Pallas TPU kernels."""
    n, f_in = x.shape
    f_in_w, f_out = weight.shape
    assert f_in == f_in_w
    assert adj.shape == (n, n)

    if tile is not None and (tile <= 0 or tile % 128 != 0):
        raise ValueError(f"tile must be a positive multiple of 128, got {tile}")

    cdt = jnp.dtype(compute_dtype)
    isz = cdt.itemsize

    # Pad only to lane-dense 128 multiples (bounds padding waste to ~3%).
    n_pad = _round_up(n, 128)
    f_in_pad = _round_up(f_in, 128)
    f_out_pad = _round_up(f_out, 128)

    cap = tile if tile is not None else None
    tm_cap = cap if cap is not None else 512
    tk_cap = cap if cap is not None else 2048

    # Row tile for the adj kernel.
    tm = _largest_divisor_tile(n_pad, tm_cap)
    # Prefer >= 2 row blocks on the "parallel" axis so v7x's two TensorCores
    # can both take work (negligible cost on single-TC v5e/v6e).
    if n_pad // tm < 2 and tm % 256 == 0:
        tm //= 2

    # Keep support resident in VMEM for the whole reduction when it is small.
    support_resident = n_pad * f_out_pad * isz <= _SUPPORT_RESIDENT_MAX

    # Reduction tile, shrunk until the kernel-2 working set fits the budget.
    def k2_vmem(tk_):
        support_bytes = (
            n_pad * f_out_pad * isz if support_resident else 2 * tk_ * f_out_pad * isz
        )
        return (
            2 * tm * tk_ * 4            # adj tile (f32 in HBM), double-buffered
            + support_bytes             # support (resident or double-buffered block)
            + tm * f_out_pad * 4        # f32 accumulator scratch
            + 2 * tm * f_out_pad * 4    # f32 output block, double-buffered
        )

    tk = _shrink_to_budget(n_pad, _largest_divisor_tile(n_pad, tk_cap), k2_vmem, _VMEM_BUDGET)

    # Row tile for kernel 1 (guard against large F_in blowing VMEM).
    def k1_vmem(tm1_):
        return (
            2 * tm1_ * f_in_pad * 4          # x tile (f32), double-buffered
            + 2 * f_in_pad * f_out_pad * 4   # weight (f32)
            + 2 * tm1_ * f_out_pad * isz     # support out, double-buffered
        )

    tm1 = _shrink_to_budget(n_pad, tm, k1_vmem, _VMEM_BUDGET)
    # TODO(synk): for F_in so large that even tm1=128 overflows, add a K grid
    # axis with an f32 accumulator (same P3 pattern as kernel 2).

    # Inputs stay in their native f32: no wrapper-side cast pass over adj (the
    # dominant N^2 term); the cast happens on the tile inside the kernels.
    x_p = _pad2d(x.astype(jnp.float32), n_pad, f_in_pad)
    w_p = _pad2d(weight.astype(jnp.float32), f_in_pad, f_out_pad)
    adj_p = _pad2d(adj.astype(jnp.float32), n_pad, n_pad)

    # --- support = X @ W (small: n_pad x f_out_pad, stored in compute dtype) --
    support = pl.pallas_call(
        partial(xw_kernel, cdt=cdt),
        out_shape=jax.ShapeDtypeStruct((n_pad, f_out_pad), cdt),
        grid_spec=pltpu.PrefetchScalarGridSpec(
            num_scalar_prefetch=0,
            grid=(n_pad // tm1,),
            in_specs=[
                pl.BlockSpec((tm1, f_in_pad), lambda i: (i, 0)),
                pl.BlockSpec((f_in_pad, f_out_pad), lambda i: (0, 0)),
            ],
            out_specs=pl.BlockSpec((tm1, f_out_pad), lambda i: (i, 0)),
        ),
        compiler_params=pltpu.CompilerParams(
            dimension_semantics=("parallel",),
            vmem_limit_bytes=_VMEM_LIMIT,
        ),
        cost_estimate=pl.CostEstimate(
            flops=int(2 * n_pad * f_in_pad * f_out_pad),
            transcendentals=0,
            bytes_accessed=int(
                n_pad * f_in_pad * 4
                + f_in_pad * f_out_pad * 4
                + n_pad * f_out_pad * isz
            ),
        ),
    )(x_p, w_p)

    # --- out = relu(adj @ support), tiled reduction over columns of adj ------
    if support_resident:
        # Same (0,0) block for every grid point -> DMA'd once, then resident.
        support_spec = pl.BlockSpec((n_pad, f_out_pad), lambda i, k: (0, 0))
        support_bytes = n_pad * f_out_pad * isz
    else:
        support_spec = pl.BlockSpec((tk, f_out_pad), lambda i, k: (k, 0))
        support_bytes = (n_pad // tm) * n_pad * f_out_pad * isz

    out_p = pl.pallas_call(
        partial(adj_relu_kernel, cdt=cdt, tk=tk, support_resident=support_resident),
        out_shape=jax.ShapeDtypeStruct((n_pad, f_out_pad), jnp.float32),
        grid_spec=pltpu.PrefetchScalarGridSpec(
            num_scalar_prefetch=0,
            grid=(n_pad // tm, n_pad // tk),
            in_specs=[
                pl.BlockSpec((tm, tk), lambda i, k: (i, k)),
                support_spec,
            ],
            # Same output block across k -> resident accumulator output.
            out_specs=pl.BlockSpec((tm, f_out_pad), lambda i, k: (i, 0)),
            scratch_shapes=[pltpu.VMEM((tm, f_out_pad), jnp.float32)],
        ),
        compiler_params=pltpu.CompilerParams(
            dimension_semantics=("parallel", "arbitrary"),
            vmem_limit_bytes=_VMEM_LIMIT,
        ),
        cost_estimate=pl.CostEstimate(
            flops=int(2 * n_pad * n_pad * f_out_pad),
            transcendentals=0,
            bytes_accessed=int(
                n_pad * n_pad * 4          # adj read (f32)
                + support_bytes            # support read(s)
                + n_pad * f_out_pad * 4    # output write (f32)
            ),
        ),
    )(adj_p, support)

    return out_p[:n, :f_out]


def xavier_uniform(key, fan_in, fan_out, dtype=jnp.float32):
    # Deterministic stand-in for torch.nn.init.xavier_uniform_ (gain=1).
    bound = math.sqrt(6.0 / (fan_in + fan_out))
    return jax.random.uniform(
        key, (fan_in, fan_out), dtype=dtype, minval=-bound, maxval=bound
    )


if __name__ == "__main__":
    # Small, deterministic example: N=64 nodes, in_features=32, out_features=16.
    key = jax.random.PRNGKey(0)
    k_x, k_adj, k_w = jax.random.split(key, 3)

    n_nodes, in_features, out_features = 64, 32, 16

    x = jax.random.normal(k_x, (n_nodes, in_features), dtype=jnp.float32)

    # Dense row-normalized adjacency (synthetic stand-in for the sparse adj).
    a = (jax.random.uniform(k_adj, (n_nodes, n_nodes)) < 0.1).astype(jnp.float32)
    a = a + a.T + jnp.eye(n_nodes, dtype=jnp.float32)
    a = jnp.clip(a, 0.0, 1.0)
    deg = jnp.sum(a, axis=1, keepdims=True)
    adj = a / deg

    weight = xavier_uniform(k_w, in_features, out_features)

    # dropout = 0.0 in the reference module -> identity; nothing to apply.

    # Default path: bf16 MXU feed (cast in-kernel), f32 accumulation.
    out = graph_convolution(x, weight, adj)
    out = jax.block_until_ready(out)
    assert out.shape == (n_nodes, out_features)

    # bf16-matched plain-JAX reference.
    xb, wb, ab = (t.astype(jnp.bfloat16) for t in (x, weight, adj))
    s_ref = jnp.dot(xb, wb, preferred_element_type=jnp.float32)
    ref_bf16 = jnp.maximum(
        jnp.dot(ab, s_ref.astype(jnp.bfloat16), preferred_element_type=jnp.float32),
        0.0,
    )
    assert jnp.allclose(out, ref_bf16, atol=2e-2, rtol=2e-2)

    # Full-f32 path for a tight-tolerance sanity check.
    out_f32 = graph_convolution(x, weight, adj, compute_dtype=jnp.float32)
    out_f32 = jax.block_until_ready(out_f32)
    ref_f32 = jnp.maximum(adj @ (x @ weight), 0.0)
    assert jnp.allclose(out_f32, ref_f32, atol=1e-4, rtol=1e-4)

    print("KERNEL_OK")
</pallas_src>

<mosaic_0001>
module attributes {stable_mosaic.version = 11 : i64} {
  func.func @adj_relu_kernel(%arg0: i32, %arg1: i32, %arg2: memref<128x128xf32, #tpu.memory_space<vmem>>, %arg3: memref<128x128xbf16, #tpu.memory_space<vmem>>, %arg4: memref<128x128xf32, #tpu.memory_space<vmem>>, %arg5: memref<128x128xf32, #tpu.memory_space<vmem>>) attributes {dimension_semantics = [#tpu.dimension_semantics<parallel>, #tpu.dimension_semantics<arbitrary>], iteration_bounds = array<i64: 1, 1>, scalar_prefetch = 0 : i64, scratch_operands = 1 : i64, tpu.core_type = #tpu.core_type<tc>, window_params = [{transform_indices = @transform_0, window_bounds = array<i64: 128, 128>}, {pipeline_mode = #tpu.pipeline_mode<synchronous>, transform_indices = @transform_1, window_bounds = array<i64: 128, 128>}, {transform_indices = @transform_2, window_bounds = array<i64: 128, 128>}]} {
    %c0_i32 = arith.constant 0 : i32
    %0 = arith.cmpi eq, %arg1, %c0_i32 : i32
    %1 = arith.extui %0 : i1 to i32
    %c0_i32_0 = arith.constant 0 : i32
    %2 = arith.cmpi ne, %1, %c0_i32_0 : i32
    scf.if %2 {
      %cst_9 = arith.constant 0.000000e+00 : f32
      %16 = vector.broadcast %cst_9 : f32 to vector<128x128xf32>
      %c0_10 = arith.constant 0 : index
      %c0_11 = arith.constant 0 : index
      %17 = vector.load %arg5[%c0_10, %c0_11] : memref<128x128xf32, #tpu.memory_space<vmem>>, vector<128x128xf32>
      tpu.vector_store %arg5[%c0_10, %c0_11], %16 {strides = array<i32>} : memref<128x128xf32, #tpu.memory_space<vmem>>, vector<128x128xf32>,
    } else {
    }
    %c0 = arith.constant 0 : index
    %c0_1 = arith.constant 0 : index
    %3 = vector.load %arg2[%c0, %c0_1] : memref<128x128xf32, #tpu.memory_space<vmem>>, vector<128x128xf32>
    %4 = arith.truncf %3 : vector<128x128xf32> to vector<128x128xbf16>
    %c128_i32 = arith.constant 128 : i32
    %5 = arith.muli %arg1, %c128_i32 : i32
    %6 = tpu.assume_multiple %5, 128 : i32
    %7 = arith.index_cast %6 : i32 to index
    %c0_2 = arith.constant 0 : index
    %8 = vector.load %arg3[%7, %c0_2] : memref<128x128xbf16, #tpu.memory_space<vmem>>, vector<128x128xbf16>
    %c0_3 = arith.constant 0 : index
    %c0_4 = arith.constant 0 : index
    %9 = vector.load %arg5[%c0_3, %c0_4] : memref<128x128xf32, #tpu.memory_space<vmem>>, vector<128x128xf32>
    %cst = arith.constant dense<0.000000e+00> : vector<128x128xf32>
    %10 = tpu.matmul %4, %8, %cst {dimension_numbers = #tpu.dot_dimension_numbers<[1], [0], [0], [1], [0, 0, 1, 1], [], []>} : vector<128x128xbf16>, vector<128x128xbf16>, vector<128x128xf32> -> vector<128x128xf32>
    %11 = arith.addf %9, %10 : vector<128x128xf32>
    %c0_5 = arith.constant 0 : index
    %c0_6 = arith.constant 0 : index
    %12 = vector.load %arg5[%c0_5, %c0_6] : memref<128x128xf32, #tpu.memory_space<vmem>>, vector<128x128xf32>
    tpu.vector_store %arg5[%c0_5, %c0_6], %11 {strides = array<i32>} : memref<128x128xf32, #tpu.memory_space<vmem>>, vector<128x128xf32>,
    %c0_i32_7 = arith.constant 0 : i32
    %13 = arith.cmpi eq, %arg1, %c0_i32_7 : i32
    %14 = arith.extui %13 : i1 to i32
    %c0_i32_8 = arith.constant 0 : i32
    %15 = arith.cmpi ne, %14, %c0_i32_8 : i32
    scf.if %15 {
      %c0_9 = arith.constant 0 : index
      %c0_10 = arith.constant 0 : index
      %16 = vector.load %arg5[%c0_9, %c0_10] : memref<128x128xf32, #tpu.memory_space<vmem>>, vector<128x128xf32>
      %cst_11 = arith.constant 0.000000e+00 : f32
      %17 = vector.broadcast %cst_11 : f32 to vector<128x128xf32>
      %18 = arith.maximumf %16, %17 : vector<128x128xf32>
      %c0_12 = arith.constant 0 : index
      %c0_13 = arith.constant 0 : index
      %19 = vector.load %arg4[%c0_12, %c0_13] : memref<128x128xf32, #tpu.memory_space<vmem>>, vector<128x128xf32>
      tpu.vector_store %arg4[%c0_12, %c0_13], %18 {strides = array<i32>} : memref<128x128xf32, #tpu.memory_space<vmem>>, vector<128x128xf32>,
    } else {
    }
    return
  }
  func.func @transform_0(%arg0: i32, %arg1: i32) -> (i32, i32) {
    %c0_i32 = arith.constant 0 : i32
    return %arg0, %arg1 : i32, i32
  }
  func.func @transform_1(%arg0: i32, %arg1: i32) -> (i32, i32) {
    %c0_i32 = arith.constant 0 : i32
    %c0_i32_0 = arith.constant 0 : i32
    %c0_i32_1 = arith.constant 0 : i32
    return %c0_i32, %c0_i32_0 : i32, i32
  }
  func.func @transform_2(%arg0: i32, %arg1: i32) -> (i32, i32) {
    %c0_i32 = arith.constant 0 : i32
    %c0_i32_0 = arith.constant 0 : i32
    return %arg0, %c0_i32 : i32, i32
  }
}

module attributes {stable_mosaic.version = 11 : i64} {
  func.func @xw_kernel(%arg0: i32, %arg1: memref<128x128xf32, #tpu.memory_space<vmem>>, %arg2: memref<128x128xf32, #tpu.memory_space<vmem>>, %arg3: memref<128x128xbf16, #tpu.memory_space<vmem>>) attributes {dimension_semantics = [#tpu.dimension_semantics<parallel>], iteration_bounds = array<i64: 1>, scalar_prefetch = 0 : i64, scratch_operands = 0 : i64, tpu.core_type = #tpu.core_type<tc>, window_params = [{transform_indices = @transform_0, window_bounds = array<i64: 128, 128>}, {pipeline_mode = #tpu.pipeline_mode<synchronous>, transform_indices = @transform_1, window_bounds = array<i64: 128, 128>}, {transform_indices = @transform_2, window_bounds = array<i64: 128, 128>}]} {
    %c0 = arith.constant 0 : index
    %c0_0 = arith.constant 0 : index
    %0 = vector.load %arg1[%c0, %c0_0] : memref<128x128xf32, #tpu.memory_space<vmem>>, vector<128x128xf32>
    %1 = arith.truncf %0 : vector<128x128xf32> to vector<128x128xbf16>
    %c0_1 = arith.constant 0 : index
    %c0_2 = arith.constant 0 : index
    %2 = vector.load %arg2[%c0_1, %c0_2] : memref<128x128xf32, #tpu.memory_space<vmem>>, vector<128x128xf32>
    %3 = arith.truncf %2 : vector<128x128xf32> to vector<128x128xbf16>
    %cst = arith.constant dense<0.000000e+00> : vector<128x128xf32>
    %4 = tpu.matmul %1, %3, %cst {dimension_numbers = #tpu.dot_dimension_numbers<[1], [0], [0], [1], [0, 0, 1, 1], [], []>} : vector<128x128xbf16>, vector<128x128xbf16>, vector<128x128xf32> -> vector<128x128xf32>
    %5 = arith.truncf %4 : vector<128x128xf32> to vector<128x128xbf16>
    %c0_3 = arith.constant 0 : index
    %c0_4 = arith.constant 0 : index
    %6 = vector.load %arg3[%c0_3, %c0_4] : memref<128x128xbf16, #tpu.memory_space<vmem>>, vector<128x128xbf16>
    tpu.vector_store %arg3[%c0_3, %c0_4], %5 {strides = array<i32>} : memref<128x128xbf16, #tpu.memory_space<vmem>>, vector<128x128xbf16>,
    return
  }
  func.func @transform_0(%arg0: i32) -> (i32, i32) {
    %c0_i32 = arith.constant 0 : i32
    %c0_i32_0 = arith.constant 0 : i32
    return %arg0, %c0_i32 : i32, i32
  }
  func.func @transform_1(%arg0: i32) -> (i32, i32) {
    %c0_i32 = arith.constant 0 : i32
    %c0_i32_0 = arith.constant 0 : i32
    %c0_i32_1 = arith.constant 0 : i32
    return %c0_i32, %c0_i32_0 : i32, i32
  }
  func.func @transform_2(%arg0: i32) -> (i32, i32) {
    %c0_i32 = arith.constant 0 : i32
    %c0_i32_0 = arith.constant 0 : i32
    return %arg0, %c0_i32 : i32, i32
  }
}

</mosaic_0001>

<llo_original>
// kernel: graph_convolution.2
$region0: #{graph_convolution.2}
  #allocation0 [shape = 'u32[]', space=smem, size = 0x4, offset = 0x4, fixed_abs, tag = 'smem constant byte address 0x4 - core index']
  #allocation1 [shape = 'u32[144,128]{1,0:T(1,128)}', space=vmem, size = 0x12000, scoped, tag = 'internal scratch']
  %s0 = inlined_call_operand.vmem [shape: f32[128,128], index: 0, kind: input, shape index: {}]
  %s1 = inlined_call_operand.vmem [shape: f32[128,128], index: 1, kind: input, shape index: {}]
  %s2 = inlined_call_operand.vmem [shape: bf16[128,128], index: 2, kind: output, shape index: {}]
  %s3 = sld [smem:[#allocation0]]
  $region18: #{graph_convolution.2} parent=0
    _
  %s5 = ssub.s32 1, %s3
  %s6 = scalar_select 0, %s5, %s3
  // Predicated region
  $region2: #{graph_convolution.2} parent=0 // pred_check
    _
  $region3: #{graph_convolution.2} parent=0 // pred_check_branch
    %8 = sbr.rel (0) target = $region5
  $region4: #{graph_convolution.2} parent=0 // pred_region
    _
  $region5: #{graph_convolution.2} parent=0 // pred_fallthru
    _
  // Predicated region
  $region6: #{graph_convolution.2} parent=0 // pred_check
    _
  $region7: #{graph_convolution.2} parent=0 // pred_check_branch
    %10 = sbr.rel (0) target = $region9
  $region8: #{graph_convolution.2} parent=0 // pred_region
    _
  $region9: #{graph_convolution.2} parent=0 // pred_fallthru
    _
  %v12 = vld [vmem:[%s0] sm:$0xff]
  %v13 = vld [vmem:[%s0 + $0x8] sm:$0xff]
  %v14 = vld [vmem:[%s0 + $0x10] sm:$0xff]
  %v15 = vld [vmem:[%s0 + $0x18] sm:$0xff]
  %v16 = vld [vmem:[%s0 + $0x20] sm:$0xff]
  %v17 = vld [vmem:[%s0 + $0x28] sm:$0xff]
  %v18 = vld [vmem:[%s0 + $0x30] sm:$0xff]
  %v19 = vld [vmem:[%s0 + $0x38] sm:$0xff]
  %v20 = vld [vmem:[%s0 + $0x40] sm:$0xff]
  %v21 = vld [vmem:[%s0 + $0x48] sm:$0xff]
  %v22 = vld [vmem:[%s0 + $0x50] sm:$0xff]
  %v23 = vld [vmem:[%s0 + $0x58] sm:$0xff]
  %v24 = vld [vmem:[%s0 + $0x60] sm:$0xff]
  %v25 = vld [vmem:[%s0 + $0x68] sm:$0xff]
  %v26 = vld [vmem:[%s0 + $0x70] sm:$0xff]
  %v27 = vld [vmem:[%s0 + $0x78] sm:$0xff]
  %v28 = vpack.c.bf16 %v13, %v12
  %v29 = vpack.c.bf16 %v15, %v14
  %v30 = vpack.c.bf16 %v17, %v16
  %v31 = vpack.c.bf16 %v19, %v18
  %v32 = vpack.c.bf16 %v21, %v20
  %v33 = vpack.c.bf16 %v23, %v22
  %v34 = vpack.c.bf16 %v25, %v24
  %v35 = vpack.c.bf16 %v27, %v26
  %v36 = vld [vmem:[%s1] sm:$0xff]
  %v37 = vld [vmem:[%s1 + $0x8] sm:$0xff]
  %v38 = vld [vmem:[%s1 + $0x10] sm:$0xff]
  %v39 = vld [vmem:[%s1 + $0x18] sm:$0xff]
  %v40 = vld [vmem:[%s1 + $0x20] sm:$0xff]
  %v41 = vld [vmem:[%s1 + $0x28] sm:$0xff]
  %v42 = vld [vmem:[%s1 + $0x30] sm:$0xff]
  %v43 = vld [vmem:[%s1 + $0x38] sm:$0xff]
  %v44 = vld [vmem:[%s1 + $0x40] sm:$0xff]
  %v45 = vld [vmem:[%s1 + $0x48] sm:$0xff]
  %v46 = vld [vmem:[%s1 + $0x50] sm:$0xff]
  %v47 = vld [vmem:[%s1 + $0x58] sm:$0xff]
  %v48 = vld [vmem:[%s1 + $0x60] sm:$0xff]
  %v49 = vld [vmem:[%s1 + $0x68] sm:$0xff]
  %v50 = vld [vmem:[%s1 + $0x70] sm:$0xff]
  %v51 = vld [vmem:[%s1 + $0x78] sm:$0xff]
  %v52 = vpack.c.bf16 %v37, %v36
  %v53 = vpack.c.bf16 %v39, %v38
  %v54 = vpack.c.bf16 %v41, %v40
  %v55 = vpack.c.bf16 %v43, %v42
  %v56 = vpack.c.bf16 %v45, %v44
  %v57 = vpack.c.bf16 %v47, %v46
  %v58 = vpack.c.bf16 %v49, %v48
  %v59 = vpack.c.bf16 %v51, %v50
  %60 = vmatprep.subr.bf16.mxu0 0
  %61 = vmatpush1.bf16.msra.mxu0 %v52
  %62 = vmatprep.subr.bf16.mxu0 0
  %63 = vmatpush1.bf16.msra.mxu0 %v53
  %64 = vmatprep.subr.bf16.mxu0 0
  %65 = vmatpush1.bf16.msra.mxu0 %v54
  %66 = vmatprep.subr.bf16.mxu0 0
  %67 = vmatpush1.bf16.msra.mxu0 %v55
  %68 = vmatprep.subr.bf16.mxu0 0
  %69 = vmatpush1.bf16.msra.mxu0 %v56
  %70 = vmatprep.subr.bf16.mxu0 0
  %71 = vmatpush1.bf16.msra.mxu0 %v57
  %72 = vmatprep.subr.bf16.mxu0 0
  %73 = vmatpush1.bf16.msra.mxu0 %v58
  %74 = vmatprep.subr.bf16.mxu0 0
  %75 = vmatpush1.bf16.msra.mxu0 %v59
  %76 = vmatprep.subr.bf16.mxu0 0
  %77 = vmatpush1.bf16.msra.mxu0 0
  %78 = vmatprep.subr.bf16.mxu0 0
  %79 = vmatpush1.bf16.msra.mxu0 0
  %80 = vmatprep.subr.bf16.mxu0 0
  %81 = vmatpush1.bf16.msra.mxu0 0
  %82 = vmatprep.subr.bf16.mxu0 0
  %83 = vmatpush1.bf16.msra.mxu0 0
  %84 = vmatprep.subr.bf16.mxu0 0
  %85 = vmatpush1.bf16.msra.mxu0 0
  %86 = vmatprep.subr.bf16.mxu0 0
  %87 = vmatpush1.bf16.msra.mxu0 0
  %88 = vmatprep.subr.bf16.mxu0 0
  %89 = vmatpush1.bf16.msra.mxu0 0
  %90 = vmatprep.subr.bf16.mxu0 0
  %91 = vmatpush1.bf16.msra.mxu0 0
  %92 = vmatprep.mubr.bf16.mxu0 0
  %93 = vmatmul.mubr.bf16.gmra.mrb[0].mxu0 %v28
  %v94 = vpop.f32.mrb[0].mxu0
  %v95 = vadd.f32 0.0, %v94
  %v96 = vpop.f32.mrb[0].mxu0
  %v97 = vpop.f32.mrb[0].mxu0
  %v98 = vadd.f32 0.0, %v97
  %v99 = vpop.f32.mrb[0].mxu0
  %100 = vmatprep.mubr.bf16.mxu0 0
  %101 = vmatmul.mubr.bf16.gmra.mrb[0].mxu0 %v29
  %v102 = vpop.f32.mrb[0].mxu0
  %v103 = vadd.f32 0.0, %v102
  %v104 = vpop.f32.mrb[0].mxu0
  %v105 = vpop.f32.mrb[0].mxu0
  %v106 = vadd.f32 0.0, %v105
  %v107 = vpop.f32.mrb[0].mxu0
  %108 = vmatprep.mubr.bf16.mxu0 0
  %109 = vmatmul.mubr.bf16.gmra.mrb[0].mxu0 %v30
  %v110 = vpop.f32.mrb[0].mxu0
  %v111 = vadd.f32 0.0, %v110
  %v112 = vpop.f32.mrb[0].mxu0
  %v113 = vpop.f32.mrb[0].mxu0
  %v114 = vadd.f32 0.0, %v113
  %v115 = vpop.f32.mrb[0].mxu0
  %116 = vmatprep.mubr.bf16.mxu0 0
  %117 = vmatmul.mubr.bf16.gmra.mrb[0].mxu0 %v31
  %v118 = vpop.f32.mrb[0].mxu0
  %v119 = vadd.f32 0.0, %v118
  %v120 = vpop.f32.mrb[0].mxu0
  %v121 = vpop.f32.mrb[0].mxu0
  %v122 = vadd.f32 0.0, %v121
  %v123 = vpop.f32.mrb[0].mxu0
  %124 = vmatprep.mubr.bf16.mxu0 0
  %125 = vmatmul.mubr.bf16.gmra.mrb[0].mxu0 %v32
  %v126 = vpop.f32.mrb[0].mxu0
  %v127 = vadd.f32 0.0, %v126
  %v128 = vpop.f32.mrb[0].mxu0
  %v129 = vpop.f32.mrb[0].mxu0
  %v130 = vadd.f32 0.0, %v129
  %v131 = vpop.f32.mrb[0].mxu0
  %132 = vmatprep.mubr.bf16.mxu0 0
  %133 = vmatmul.mubr.bf16.gmra.mrb[0].mxu0 %v33
  %v134 = vpop.f32.mrb[0].mxu0
  %v135 = vadd.f32 0.0, %v134
  %v136 = vpop.f32.mrb[0].mxu0
  %v137 = vpop.f32.mrb[0].mxu0
  %v138 = vadd.f32 0.0, %v137
  %v139 = vpop.f32.mrb[0].mxu0
  %140 = vmatprep.mubr.bf16.mxu0 0
  %141 = vmatmul.mubr.bf16.gmra.mrb[0].mxu0 %v34
  %v142 = vpop.f32.mrb[0].mxu0
  %v143 = vadd.f32 0.0, %v142
  %v144 = vpop.f32.mrb[0].mxu0
  %v145 = vpop.f32.mrb[0].mxu0
  %v146 = vadd.f32 0.0, %v145
  %v147 = vpop.f32.mrb[0].mxu0
  %148 = vmatprep.mubr.bf16.mxu0 0
  %149 = vmatmul.mubr.bf16.gmra.mrb[0].mxu0 %v35
  %v150 = vpop.f32.mrb[0].mxu0
  %v151 = vadd.f32 0.0, %v150
  %v152 = vpop.f32.mrb[0].mxu0
  %v153 = vpop.f32.mrb[0].mxu0
  %v154 = vadd.f32 0.0, %v153
  %v155 = vpop.f32.mrb[0].mxu0
  %156 = vdwg.mxu0
  %v157 = vpack.c.bf16 %v98, %v95
  %v158 = vpack.c.bf16 %v106, %v103
  %v159 = vpack.c.bf16 %v114, %v111
  %v160 = vpack.c.bf16 %v122, %v119
  %v161 = vpack.c.bf16 %v130, %v127
  %v162 = vpack.c.bf16 %v138, %v135
  %v163 = vpack.c.bf16 %v146, %v143
  %v164 = vpack.c.bf16 %v154, %v151
  %v173 = vunpack.c.l.b16 %v157
  %v174 = vunpack.c.h.b16 %v157
  %v175 = vunpack.c.l.b16 %v158
  %v176 = vunpack.c.h.b16 %v158
  %v177 = vunpack.c.l.b16 %v159
  %v178 = vunpack.c.h.b16 %v159
  %v179 = vunpack.c.l.b16 %v160
  %v180 = vunpack.c.h.b16 %v160
  %v181 = vunpack.c.l.b16 %v161
  %v182 = vunpack.c.h.b16 %v161
  %v183 = vunpack.c.l.b16 %v162
  %v184 = vunpack.c.h.b16 %v162
  %v185 = vunpack.c.l.b16 %v163
  %v186 = vunpack.c.h.b16 %v163
  %v187 = vunpack.c.l.b16 %v164
  %v188 = vunpack.c.h.b16 %v164
  %v189 = vpack.c.b16 %v173, %v173
  %v190 = vpack.c.b16 %v174, %v174
  %v191 = vpack.c.b16 %v175, %v175
  %v192 = vpack.c.b16 %v176, %v176
  %v193 = vpack.c.b16 %v177, %v177
  %v194 = vpack.c.b16 %v178, %v178
  %v195 = vpack.c.b16 %v179, %v179
  %v196 = vpack.c.b16 %v180, %v180
  %v197 = vpack.c.b16 %v181, %v181
  %v198 = vpack.c.b16 %v182, %v182
  %v199 = vpack.c.b16 %v183, %v183
  %v200 = vpack.c.b16 %v184, %v184
  %v201 = vpack.c.b16 %v185, %v185
  %v202 = vpack.c.b16 %v186, %v186
  %v203 = vpack.c.b16 %v187, %v187
  %v204 = vpack.c.b16 %v188, %v188
  %221 = vst [vmem:[%s2] sm:$0xf] %v189
  %222 = vst [vmem:[%s2 + $0x4] sm:$0xf] %v190
  %223 = vst [vmem:[%s2 + $0x8] sm:$0xf] %v191
  %224 = vst [vmem:[%s2 + $0xc] sm:$0xf] %v192
  %225 = vst [vmem:[%s2 + $0x10] sm:$0xf] %v193
  %226 = vst [vmem:[%s2 + $0x14] sm:$0xf] %v194
  %227 = vst [vmem:[%s2 + $0x18] sm:$0xf] %v195
  %228 = vst [vmem:[%s2 + $0x1c] sm:$0xf] %v196
  %229 = vst [vmem:[%s2 + $0x20] sm:$0xf] %v197
  %230 = vst [vmem:[%s2 + $0x24] sm:$0xf] %v198
  %231 = vst [vmem:[%s2 + $0x28] sm:$0xf] %v199
  %232 = vst [vmem:[%s2 + $0x2c] sm:$0xf] %v200
  %233 = vst [vmem:[%s2 + $0x30] sm:$0xf] %v201
  %234 = vst [vmem:[%s2 + $0x34] sm:$0xf] %v202
  %235 = vst [vmem:[%s2 + $0x38] sm:$0xf] %v203
  %236 = vst [vmem:[%s2 + $0x3c] sm:$0xf] %v204
  // Predicated region
  $region10: #{graph_convolution.2} parent=0 // pred_check
    _
  $region11: #{graph_convolution.2} parent=0 // pred_check_branch
    %238 = sbr.rel (0) target = $region13
  $region12: #{graph_convolution.2} parent=0 // pred_region
    _
  $region13: #{graph_convolution.2} parent=0 // pred_fallthru
    _
  // Predicated region
  $region14: #{graph_convolution.2} parent=0 // pred_check
    _
  $region15: #{graph_convolution.2} parent=0 // pred_check_branch
    %240 = sbr.rel (0) target = $region17
  $region16: #{graph_convolution.2} parent=0 // pred_region
    _
  $region17: #{graph_convolution.2} parent=0 // pred_fallthru
    _

// kernel: graph_convolution.3
$region0: #{graph_convolution.3}
  #allocation0 [shape = 'u32[]', space=smem, size = 0x4, offset = 0x4, fixed_abs, tag = 'smem constant byte address 0x4 - core index']
  #allocation1 [shape = 'u32[144,128]{1,0:T(1,128)}', space=vmem, size = 0x12000, scoped, tag = 'internal scratch']
  #allocation2 [shape = 'f32[128,128]{1,0:T(8,128)}', space=vmem, size = 0x10000, scoped, tag = 'scratch operand']
  %s0 = inlined_call_operand.vmem [shape: f32[128,128], index: 0, kind: input, shape index: {}]
  %s1 = inlined_call_operand.vmem [shape: bf16[128,128], index: 1, kind: input, shape index: {}]
  %s2 = inlined_call_operand.vmem [shape: f32[128,128], index: 2, kind: output, shape index: {}]
  %s3 = sld [smem:[#allocation0]]
  $region26: #{graph_convolution.3} parent=0
    _
  %s5 = ssub.s32 1, %s3
  %s6 = scalar_select 0, %s5, %s3
  // Predicated region
  $region2: #{graph_convolution.3} parent=0 // pred_check
    _
  $region3: #{graph_convolution.3} parent=0 // pred_check_branch
    %8 = sbr.rel (0) target = $region5
  $region4: #{graph_convolution.3} parent=0 // pred_region
    _
  $region5: #{graph_convolution.3} parent=0 // pred_fallthru
    _
  // Predicated region
  $region6: #{graph_convolution.3} parent=0 // pred_check
    _
  $region7: #{graph_convolution.3} parent=0 // pred_check_branch
    %10 = sbr.rel (0) target = $region9
  $region8: #{graph_convolution.3} parent=0 // pred_region
    _
  $region9: #{graph_convolution.3} parent=0 // pred_fallthru
    _
  %p12 = scmp.eq.s32.totalorder 0, 0
  // Predicated region
  $region10: #{graph_convolution.3} parent=0 // pred_check
    %p13 = pneg %p12
  $region11: #{graph_convolution.3} parent=0 // pred_check_branch
    %15 = sbr.rel (%p13) target = $region13
  $region12: #{graph_convolution.3} parent=0 // pred_region
    %16 = vst [vmem:[#allocation2] sm:$0xff] 0.0
    %17 = vst [vmem:[#allocation2 + $0x8] sm:$0xff] 0.0
    %18 = vst [vmem:[#allocation2 + $0x10] sm:$0xff] 0.0
    %19 = vst [vmem:[#allocation2 + $0x18] sm:$0xff] 0.0
    %20 = vst [vmem:[#allocation2 + $0x20] sm:$0xff] 0.0
    %21 = vst [vmem:[#allocation2 + $0x28] sm:$0xff] 0.0
    %22 = vst [vmem:[#allocation2 + $0x30] sm:$0xff] 0.0
    %23 = vst [vmem:[#allocation2 + $0x38] sm:$0xff] 0.0
    %24 = vst [vmem:[#allocation2 + $0x40] sm:$0xff] 0.0
    %25 = vst [vmem:[#allocation2 + $0x48] sm:$0xff] 0.0
    %26 = vst [vmem:[#allocation2 + $0x50] sm:$0xff] 0.0
    %27 = vst [vmem:[#allocation2 + $0x58] sm:$0xff] 0.0
    %28 = vst [vmem:[#allocation2 + $0x60] sm:$0xff] 0.0
    %29 = vst [vmem:[#allocation2 + $0x68] sm:$0xff] 0.0
    %30 = vst [vmem:[#allocation2 + $0x70] sm:$0xff] 0.0
    %31 = vst [vmem:[#allocation2 + $0x78] sm:$0xff] 0.0
  $region13: #{graph_convolution.3} parent=0 // pred_fallthru
    _
  %v32 = vld [vmem:[%s0] sm:$0xff]
  %v33 = vld [vmem:[%s0 + $0x8] sm:$0xff]
  %v34 = vld [vmem:[%s0 + $0x10] sm:$0xff]
  %v35 = vld [vmem:[%s0 + $0x18] sm:$0xff]
  %v36 = vld [vmem:[%s0 + $0x20] sm:$0xff]
  %v37 = vld [vmem:[%s0 + $0x28] sm:$0xff]
  %v38 = vld [vmem:[%s0 + $0x30] sm:$0xff]
  %v39 = vld [vmem:[%s0 + $0x38] sm:$0xff]
  %v40 = vld [vmem:[%s0 + $0x40] sm:$0xff]
  %v41 = vld [vmem:[%s0 + $0x48] sm:$0xff]
  %v42 = vld [vmem:[%s0 + $0x50] sm:$0xff]
  %v43 = vld [vmem:[%s0 + $0x58] sm:$0xff]
  %v44 = vld [vmem:[%s0 + $0x60] sm:$0xff]
  %v45 = vld [vmem:[%s0 + $0x68] sm:$0xff]
  %v46 = vld [vmem:[%s0 + $0x70] sm:$0xff]
  %v47 = vld [vmem:[%s0 + $0x78] sm:$0xff]
  %v48 = vpack.c.bf16 %v33, %v32
  %v49 = vpack.c.bf16 %v35, %v34
  %v50 = vpack.c.bf16 %v37, %v36
  %v51 = vpack.c.bf16 %v39, %v38
  %v52 = vpack.c.bf16 %v41, %v40
  %v53 = vpack.c.bf16 %v43, %v42
  %v54 = vpack.c.bf16 %v45, %v44
  %v55 = vpack.c.bf16 %v47, %v46
  %s56 = smul.u32 0, 128
  %s57 = sshra.s32 %s56, 3
  %s58 = sand.u32 %s56, 7
  %s59 = smul.addr %s57, 4
  %s60 = scalar_lea.vmem %s1, %s59
  %v61 = vld [vmem:[%s60] sm:$0xf]
  %v62 = vld [vmem:[%s60 + $0x4] sm:$0xf]
  %v63 = vld [vmem:[%s60 + $0x8] sm:$0xf]
  %v64 = vld [vmem:[%s60 + $0xc] sm:$0xf]
  %v65 = vld [vmem:[%s60 + $0x10] sm:$0xf]
  %v66 = vld [vmem:[%s60 + $0x14] sm:$0xf]
  %v67 = vld [vmem:[%s60 + $0x18] sm:$0xf]
  %v68 = vld [vmem:[%s60 + $0x1c] sm:$0xf]
  %v69 = vld [vmem:[%s60 + $0x20] sm:$0xf]
  %v70 = vld [vmem:[%s60 + $0x24] sm:$0xf]
  %v71 = vld [vmem:[%s60 + $0x28] sm:$0xf]
  %v72 = vld [vmem:[%s60 + $0x2c] sm:$0xf]
  %v73 = vld [vmem:[%s60 + $0x30] sm:$0xf]
  %v74 = vld [vmem:[%s60 + $0x34] sm:$0xf]
  %v75 = vld [vmem:[%s60 + $0x38] sm:$0xf]
  %v76 = vld [vmem:[%s60 + $0x3c] sm:$0xf]
  %v77 = vld [vmem:[#allocation2] sm:$0xff]
  %v78 = vld [vmem:[#allocation2 + $0x8] sm:$0xff]
  %v79 = vld [vmem:[#allocation2 + $0x10] sm:$0xff]
  %v80 = vld [vmem:[#allocation2 + $0x18] sm:$0xff]
  %v81 = vld [vmem:[#allocation2 + $0x20] sm:$0xff]
  %v82 = vld [vmem:[#allocation2 + $0x28] sm:$0xff]
  %v83 = vld [vmem:[#allocation2 + $0x30] sm:$0xff]
  %v84 = vld [vmem:[#allocation2 + $0x38] sm:$0xff]
  %v85 = vld [vmem:[#allocation2 + $0x40] sm:$0xff]
  %v86 = vld [vmem:[#allocation2 + $0x48] sm:$0xff]
  %v87 = vld [vmem:[#allocation2 + $0x50] sm:$0xff]
  %v88 = vld [vmem:[#allocation2 + $0x58] sm:$0xff]
  %v89 = vld [vmem:[#allocation2 + $0x60] sm:$0xff]
  %v90 = vld [vmem:[#allocation2 + $0x68] sm:$0xff]
  %v91 = vld [vmem:[#allocation2 + $0x70] sm:$0xff]
  %v92 = vld [vmem:[#allocation2 + $0x78] sm:$0xff]
  %v109 = vunpack.c.l.b16 %v61
  %v110 = vunpack.c.l.b16 %v62
  %v111 = vunpack.c.l.b16 %v63
  %v112 = vunpack.c.l.b16 %v64
  %v113 = vunpack.c.l.b16 %v65
  %v114 = vunpack.c.l.b16 %v66
  %v115 = vunpack.c.l.b16 %v67
  %v116 = vunpack.c.l.b16 %v68
  %v117 = vunpack.c.l.b16 %v69
  %v118 = vunpack.c.l.b16 %v70
  %v119 = vunpack.c.l.b16 %v71
  %v120 = vunpack.c.l.b16 %v72
  %v121 = vunpack.c.l.b16 %v73
  %v122 = vunpack.c.l.b16 %v74
  %v123 = vunpack.c.l.b16 %v75
  %v124 = vunpack.c.l.b16 %v76
  %v125 = vpack.c.b16 %v110, %v109
  %v126 = vpack.c.b16 %v112, %v111
  %v127 = vpack.c.b16 %v114, %v113
  %v128 = vpack.c.b16 %v116, %v115
  %v129 = vpack.c.b16 %v118, %v117
  %v130 = vpack.c.b16 %v120, %v119
  %v131 = vpack.c.b16 %v122, %v121
  %v132 = vpack.c.b16 %v124, %v123
  %141 = vmatprep.subr.bf16.mxu0 0
  %142 = vmatpush1.bf16.msra.mxu0 %v125
  %143 = vmatprep.subr.bf16.mxu0 0
  %144 = vmatpush1.bf16.msra.mxu0 %v126
  %145 = vmatprep.subr.bf16.mxu0 0
  %146 = vmatpush1.bf16.msra.mxu0 %v127
  %147 = vmatprep.subr.bf16.mxu0 0
  %148 = vmatpush1.bf16.msra.mxu0 %v128
  %149 = vmatprep.subr.bf16.mxu0 0
  %150 = vmatpush1.bf16.msra.mxu0 %v129
  %151 = vmatprep.subr.bf16.mxu0 0
  %152 = vmatpush1.bf16.msra.mxu0 %v130
  %153 = vmatprep.subr.bf16.mxu0 0
  %154 = vmatpush1.bf16.msra.mxu0 %v131
  %155 = vmatprep.subr.bf16.mxu0 0
  %156 = vmatpush1.bf16.msra.mxu0 %v132
  %157 = vmatprep.subr.bf16.mxu0 0
  %158 = vmatpush1.bf16.msra.mxu0 0
  %159 = vmatprep.subr.bf16.mxu0 0
  %160 = vmatpush1.bf16.msra.mxu0 0
  %161 = vmatprep.subr.bf16.mxu0 0
  %162 = vmatpush1.bf16.msra.mxu0 0
  %163 = vmatprep.subr.bf16.mxu0 0
  %164 = vmatpush1.bf16.msra.mxu0 0
  %165 = vmatprep.subr.bf16.mxu0 0
  %166 = vmatpush1.bf16.msra.mxu0 0
  %167 = vmatprep.subr.bf16.mxu0 0
  %168 = vmatpush1.bf16.msra.mxu0 0
  %169 = vmatprep.subr.bf16.mxu0 0
  %170 = vmatpush1.bf16.msra.mxu0 0
  %171 = vmatprep.subr.bf16.mxu0 0
  %172 = vmatpush1.bf16.msra.mxu0 0
  %173 = vmatprep.mubr.bf16.mxu0 0
  %174 = vmatmul.mubr.bf16.gmra.mrb[0].mxu0 %v48
  %v175 = vpop.f32.mrb[0].mxu0
  %v176 = vadd.f32 0.0, %v175
  %v177 = vpop.f32.mrb[0].mxu0
  %v178 = vpop.f32.mrb[0].mxu0
  %v179 = vadd.f32 0.0, %v178
  %v180 = vpop.f32.mrb[0].mxu0
  %181 = vmatprep.mubr.bf16.mxu0 0
  %182 = vmatmul.mubr.bf16.gmra.mrb[0].mxu0 %v49
  %v183 = vpop.f32.mrb[0].mxu0
  %v184 = vadd.f32 0.0, %v183
  %v185 = vpop.f32.mrb[0].mxu0
  %v186 = vpop.f32.mrb[0].mxu0
  %v187 = vadd.f32 0.0, %v186
  %v188 = vpop.f32.mrb[0].mxu0
  %189 = vmatprep.mubr.bf16.mxu0 0
  %190 = vmatmul.mubr.bf16.gmra.mrb[0].mxu0 %v50
  %v191 = vpop.f32.mrb[0].mxu0
  %v192 = vadd.f32 0.0, %v191
  %v193 = vpop.f32.mrb[0].mxu0
  %v194 = vpop.f32.mrb[0].mxu0
  %v195 = vadd.f32 0.0, %v194
  %v196 = vpop.f32.mrb[0].mxu0
  %197 = vmatprep.mubr.bf16.mxu0 0
  %198 = vmatmul.mubr.bf16.gmra.mrb[0].mxu0 %v51
  %v199 = vpop.f32.mrb[0].mxu0
  %v200 = vadd.f32 0.0, %v199
  %v201 = vpop.f32.mrb[0].mxu0
  %v202 = vpop.f32.mrb[0].mxu0
  %v203 = vadd.f32 0.0, %v202
  %v204 = vpop.f32.mrb[0].mxu0
  %205 = vmatprep.mubr.bf16.mxu0 0
  %206 = vmatmul.mubr.bf16.gmra.mrb[0].mxu0 %v52
  %v207 = vpop.f32.mrb[0].mxu0
  %v208 = vadd.f32 0.0, %v207
  %v209 = vpop.f32.mrb[0].mxu0
  %v210 = vpop.f32.mrb[0].mxu0
  %v211 = vadd.f32 0.0, %v210
  %v212 = vpop.f32.mrb[0].mxu0
  %213 = vmatprep.mubr.bf16.mxu0 0
  %214 = vmatmul.mubr.bf16.gmra.mrb[0].mxu0 %v53
  %v215 = vpop.f32.mrb[0].mxu0
  %v216 = vadd.f32 0.0, %v215
  %v217 = vpop.f32.mrb[0].mxu0
  %v218 = vpop.f32.mrb[0].mxu0
  %v219 = vadd.f32 0.0, %v218
  %v220 = vpop.f32.mrb[0].mxu0
  %221 = vmatprep.mubr.bf16.mxu0 0
  %222 = vmatmul.mubr.bf16.gmra.mrb[0].mxu0 %v54
  %v223 = vpop.f32.mrb[0].mxu0
  %v224 = vadd.f32 0.0, %v223
  %v225 = vpop.f32.mrb[0].mxu0
  %v226 = vpop.f32.mrb[0].mxu0
  %v227 = vadd.f32 0.0, %v226
  %v228 = vpop.f32.mrb[0].mxu0
  %229 = vmatprep.mubr.bf16.mxu0 0
  %230 = vmatmul.mubr.bf16.gmra.mrb[0].mxu0 %v55
  %v231 = vpop.f32.mrb[0].mxu0
  %v232 = vadd.f32 0.0, %v231
  %v233 = vpop.f32.mrb[0].mxu0
  %v234 = vpop.f32.mrb[0].mxu0
  %v235 = vadd.f32 0.0, %v234
  %v236 = vpop.f32.mrb[0].mxu0
  %237 = vdwg.mxu0
  %v238 = vadd.f32 %v77, %v176
  %v239 = vadd.f32 %v78, %v179
  %v240 = vadd.f32 %v79, %v184
  %v241 = vadd.f32 %v80, %v187
  %v242 = vadd.f32 %v81, %v192
  %v243 = vadd.f32 %v82, %v195
  %v244 = vadd.f32 %v83, %v200
  %v245 = vadd.f32 %v84, %v203
  %v246 = vadd.f32 %v85, %v208
  %v247 = vadd.f32 %v86, %v211
  %v248 = vadd.f32 %v87, %v216
  %v249 = vadd.f32 %v88, %v219
  %v250 = vadd.f32 %v89, %v224
  %v251 = vadd.f32 %v90, %v227
  %v252 = vadd.f32 %v91, %v232
  %v253 = vadd.f32 %v92, %v235
  %254 = vst [vmem:[#allocation2] sm:$0xff] %v238
  %255 = vst [vmem:[#allocation2 + $0x8] sm:$0xff] %v239
  %256 = vst [vmem:[#allocation2 + $0x10] sm:$0xff] %v240
  %257 = vst [vmem:[#allocation2 + $0x18] sm:$0xff] %v241
  %258 = vst [vmem:[#allocation2 + $0x20] sm:$0xff] %v242
  %259 = vst [vmem:[#allocation2 + $0x28] sm:$0xff] %v243
  %260 = vst [vmem:[#allocation2 + $0x30] sm:$0xff] %v244
  %261 = vst [vmem:[#allocation2 + $0x38] sm:$0xff] %v245
  %262 = vst [vmem:[#allocation2 + $0x40] sm:$0xff] %v246
  %263 = vst [vmem:[#allocation2 + $0x48] sm:$0xff] %v247
  %264 = vst [vmem:[#allocation2 + $0x50] sm:$0xff] %v248
  %265 = vst [vmem:[#allocation2 + $0x58] sm:$0xff] %v249
  %266 = vst [vmem:[#allocation2 + $0x60] sm:$0xff] %v250
  %267 = vst [vmem:[#allocation2 + $0x68] sm:$0xff] %v251
  %268 = vst [vmem:[#allocation2 + $0x70] sm:$0xff] %v252
  %269 = vst [vmem:[#allocation2 + $0x78] sm:$0xff] %v253
  // Predicated region
  $region14: #{graph_convolution.3} parent=0 // pred_check
    %p270 = pneg %p12
  $region15: #{graph_convolution.3} parent=0 // pred_check_branch
    %272 = sbr.rel (%p270) target = $region17
  $region16: #{graph_convolution.3} parent=0 // pred_region
    %v273 = vld [vmem:[#allocation2] sm:$0xff]
    %v274 = vld [vmem:[#allocation2 + $0x8] sm:$0xff]
    %v275 = vld [vmem:[#allocation2 + $0x10] sm:$0xff]
    %v276 = vld [vmem:[#allocation2 + $0x18] sm:$0xff]
    %v277 = vld [vmem:[#allocation2 + $0x20] sm:$0xff]
    %v278 = vld [vmem:[#allocation2 + $0x28] sm:$0xff]
    %v279 = vld [vmem:[#allocation2 + $0x30] sm:$0xff]
    %v280 = vld [vmem:[#allocation2 + $0x38] sm:$0xff]
    %v281 = vld [vmem:[#allocation2 + $0x40] sm:$0xff]
    %v282 = vld [vmem:[#allocation2 + $0x48] sm:$0xff]
    %v283 = vld [vmem:[#allocation2 + $0x50] sm:$0xff]
    %v284 = vld [vmem:[#allocation2 + $0x58] sm:$0xff]
    %v285 = vld [vmem:[#allocation2 + $0x60] sm:$0xff]
    %v286 = vld [vmem:[#allocation2 + $0x68] sm:$0xff]
    %v287 = vld [vmem:[#allocation2 + $0x70] sm:$0xff]
    %v288 = vld [vmem:[#allocation2 + $0x78] sm:$0xff]
    %v289 = vmax.f32 %v273, 0.0
    %v290 = vmax.f32 %v274, 0.0
    %v291 = vmax.f32 %v275, 0.0
    %v292 = vmax.f32 %v276, 0.0
    %v293 = vmax.f32 %v277, 0.0
    %v294 = vmax.f32 %v278, 0.0
    %v295 = vmax.f32 %v279, 0.0
    %v296 = vmax.f32 %v280, 0.0
    %v297 = vmax.f32 %v281, 0.0
    %v298 = vmax.f32 %v282, 0.0
    %v299 = vmax.f32 %v283, 0.0
    %v300 = vmax.f32 %v284, 0.0
    %v301 = vmax.f32 %v285, 0.0
    %v302 = vmax.f32 %v286, 0.0
    %v303 = vmax.f32 %v287, 0.0
    %v304 = vmax.f32 %v288, 0.0
    %305 = vst [vmem:[%s2] sm:$0xff] %v289
    %306 = vst [vmem:[%s2 + $0x8] sm:$0xff] %v290
    %307 = vst [vmem:[%s2 + $0x10] sm:$0xff] %v291
    %308 = vst [vmem:[%s2 + $0x18] sm:$0xff] %v292
    %309 = vst [vmem:[%s2 + $0x20] sm:$0xff] %v293
    %310 = vst [vmem:[%s2 + $0x28] sm:$0xff] %v294
    %311 = vst [vmem:[%s2 + $0x30] sm:$0xff] %v295
    %312 = vst [vmem:[%s2 + $0x38] sm:$0xff] %v296
    %313 = vst [vmem:[%s2 + $0x40] sm:$0xff] %v297
    %314 = vst [vmem:[%s2 + $0x48] sm:$0xff] %v298
    %315 = vst [vmem:[%s2 + $0x50] sm:$0xff] %v299
    %316 = vst [vmem:[%s2 + $0x58] sm:$0xff] %v300
    %317 = vst [vmem:[%s2 + $0x60] sm:$0xff] %v301
    %318 = vst [vmem:[%s2 + $0x68] sm:$0xff] %v302
    %319 = vst [vmem:[%s2 + $0x70] sm:$0xff] %v303
    %320 = vst [vmem:[%s2 + $0x78] sm:$0xff] %v304
  $region17: #{graph_convolution.3} parent=0 // pred_fallthru
    _
  // Predicated region
  $region18: #{graph_convolution.3} parent=0 // pred_check
    _
  $region19: #{graph_convolution.3} parent=0 // pred_check_branch
    %322 = sbr.rel (0) target = $region21
  $region20: #{graph_convolution.3} parent=0 // pred_region
    _
  $region21: #{graph_convolution.3} parent=0 // pred_fallthru
    _
  // Predicated region
  $region22: #{graph_convolution.3} parent=0 // pred_check
    _
  $region23: #{graph_convolution.3} parent=0 // pred_check_branch
    %324 = sbr.rel (0) target = $region25
  $region24: #{graph_convolution.3} parent=0 // pred_region
    _
  $region25: #{graph_convolution.3} parent=0 // pred_fallthru
    _

</llo_original>
